<compile_context>
chip_gen: v7x
topology: tpu7x:2x2x1
jax: 0.10.0
libtpu: 0.0.40
codegen_flags: <defaults>
</compile_context>

<pallas_src>
import functools

import jax
import jax.numpy as jnp
from jax.experimental import pallas as pl
from jax.experimental.pallas import tpu as pltpu


# ------------------------------- Pallas kernel ------------------------------


def _sepconv_bn_kernel(x_ref, masks_ref, wd_ref, wp_ref, gb_ref, o_ref,
                       *, W, K, dil, pad, cin, eps, use_mxu):
    """Fused depthwise conv + ReLU + 1x1 conv + BatchNorm(train) + ReLU.

    Lane-dense layouts (lanes = N*H*W, flattened as (n, h, w)):
      x_ref     : (cin,   L)    input activations
      masks_ref : (K*K,   L)    f32 {0,1} boundary masks, one row per tap
      wd_ref    : (cin,   K*K)  depthwise taps
      wp_ref    : (tc,    cin)  pointwise weights for this cout tile
      gb_ref    : (tc,    2)    [:,0]=gamma, [:,1]=beta for this cout tile
      o_ref     : (tc,    L)    output tile
    """
    L = x_ref.shape[1]
    xf = x_ref[...]                      # (cin, L)
    wd = wd_ref[...]                     # (cin, K*K)
    masks = masks_ref[...]               # (K*K, L)

    # ---- depthwise KxK conv + ReLU: 9 XLU lane-rotates + masked VPU FMAs ----
    acc = jnp.zeros(xf.shape, jnp.float32)
    for kh in range(K):
        for kw in range(K):
            t = kh * K + kw
            dh = kh * dil - pad
            dw = kw * dil - pad
            off = dh * W + dw
            tap = wd[:, t:t + 1]                        # (cin, 1)
            if dh == 0 and dw == 0:
                acc = acc + xf * tap                    # center tap: no roll/mask
            else:
                # shifted[l] = xf[l + off]; wrap-around / cross-image reads land
                # only on positions the mask zeroes out.
                shifted = pltpu.roll(xf, shift=(-off) % L, axis=1)
                acc = acc + (shifted * masks[t:t + 1, :]) * tap
    acc = jnp.maximum(acc, 0.0)                         # ReLU after depthwise

    # ---- pointwise 1x1 conv for this cout tile ------------------------------
    wp = wp_ref[...]                                    # (tc, cin)
    if use_mxu:
        # TODO(synk): for large cin/cout, cast operands to bf16 here (with
        # preferred_element_type=f32) for higher MXU throughput if tolerances
        # allow.
        z = jnp.dot(wp, acc, preferred_element_type=jnp.float32)
    else:
        # Tiny channel counts: an MXU matmul would be almost all padding;
        # do cin broadcast-tap FMAs on the VPU instead.
        z = wp[:, 0:1] * acc[0:1, :]
        for ci in range(1, cin):
            z = z + wp[:, ci:ci + 1] * acc[ci:ci + 1, :]

    # ---- BatchNorm2d (training-mode batch stats, two-pass) + ReLU -----------
    gb = gb_ref[...]
    gamma = gb[:, 0:1]                                  # (tc, 1)
    beta = gb[:, 1:2]
    inv_count = 1.0 / L                                 # L = N*H*W (static)
    mean = jnp.sum(z, axis=1, keepdims=True) * inv_count
    cent = z - mean
    var = jnp.sum(cent * cent, axis=1, keepdims=True) * inv_count  # biased
    scale = gamma * jax.lax.rsqrt(var + eps)
    o_ref[...] = jnp.maximum(cent * scale + beta, 0.0)


# ------------------------------- Host wrapper -------------------------------


def _pick_cout_tile(cout):
    # Two parallel cout tiles (one per v7x TensorCore) whenever the tile stays
    # a multiple of 8 sublanes; otherwise a single tile.  Depthwise work is
    # recomputed per tile, which is cheap relative to the pointwise conv at
    # realistic channel counts.
    if cout >= 16 and cout % 16 == 0:
        return cout // 2
    return cout


def sep_conv_bn(x_nchw, wd_oihw, wp_oihw, gamma, beta,
                *, kernel_size=3, dilation=1, padding=1, eps=1e-5):
    """Forward pass of SepConvBN. Input/output in PyTorch NCHW layout."""
    N, cin, H, W = x_nchw.shape
    cout = wp_oihw.shape[0]
    K, dil, pad = kernel_size, dilation, padding

    # Guard: this fused kernel assumes a "same"-size depthwise conv.
    if dil * (K - 1) != 2 * pad:
        # TODO(synk): support output sizes != input size (general pad/dilation).
        raise NotImplementedError("requires dilation*(kernel_size-1) == 2*padding")

    HW = H * W
    L = N * HW
    f32 = jnp.float32

    # --- layout glue: channels -> sublanes, (n,h,w) -> lanes ------------------
    xf = x_nchw.astype(f32).transpose(1, 0, 2, 3).reshape(cin, L)     # (cin, L)
    wd = wd_oihw.astype(f32)[:, 0].reshape(cin, K * K)                # (cin, 9)
    wp = wp_oihw.astype(f32)[:, :, 0, 0]                              # (cout, cin)
    gb = jnp.stack([gamma.astype(f32), beta.astype(f32)], axis=1)     # (cout, 2)

    # 9 boundary masks, built once on the host (constant-folded by XLA).
    l_idx = jnp.arange(L, dtype=jnp.int32)
    hw = l_idx % HW
    h_idx = hw // W
    w_idx = hw % W
    mask_rows = []
    for kh in range(K):
        for kw in range(K):
            dh = kh * dil - pad
            dw = kw * dil - pad
            valid = ((h_idx + dh >= 0) & (h_idx + dh < H) &
                     (w_idx + dw >= 0) & (w_idx + dw < W))
            mask_rows.append(valid.astype(f32))
    masks = jnp.stack(mask_rows, axis=0)                              # (9, L)

    tc = _pick_cout_tile(cout)
    n_tiles = cout // tc
    use_mxu = cin >= 32

    # TODO(synk): for realistic H*W / channel counts, additionally tile the
    # lane axis into H row-bands (with a +/-pad*W halo) and raise
    # vmem_limit_bytes so the slabs fit v7x's 64 MiB VMEM.
    kern = functools.partial(_sepconv_bn_kernel, W=W, K=K, dil=dil, pad=pad,
                             cin=cin, eps=eps, use_mxu=use_mxu)

    zf = pl.pallas_call(
        kern,
        out_shape=jax.ShapeDtypeStruct((cout, L), f32),
        grid=(n_tiles,),
        in_specs=[
            pl.BlockSpec((cin, L), lambda j: (0, 0)),
            pl.BlockSpec((K * K, L), lambda j: (0, 0)),
            pl.BlockSpec((cin, K * K), lambda j: (0, 0)),
            pl.BlockSpec((tc, cin), lambda j: (j, 0)),
            pl.BlockSpec((tc, 2), lambda j: (j, 0)),
        ],
        out_specs=pl.BlockSpec((tc, L), lambda j: (j, 0)),
        compiler_params=pltpu.CompilerParams(
            dimension_semantics=("parallel",)),
    )(xf, masks, wd, wp, gb)

    # Layout glue back to NCHW.
    return zf.reshape(cout, N, H, W).transpose(1, 0, 2, 3)


# --------------------------------- Reference ---------------------------------


def _reference(x_nchw, wd_oihw, wp_oihw, gamma, beta,
               *, kernel_size, dilation, padding, eps=1e-5):
    cin = x_nchw.shape[1]
    y = jax.lax.conv_general_dilated(
        x_nchw, wd_oihw, window_strides=(1, 1),
        padding=[(padding, padding), (padding, padding)],
        rhs_dilation=(dilation, dilation), feature_group_count=cin,
        dimension_numbers=("NCHW", "OIHW", "NCHW"))
    y = jnp.maximum(y, 0.0)
    z = jax.lax.conv_general_dilated(
        y, wp_oihw, window_strides=(1, 1), padding="VALID",
        dimension_numbers=("NCHW", "OIHW", "NCHW"))
    mean = jnp.mean(z, axis=(0, 2, 3), keepdims=True)
    var = jnp.var(z, axis=(0, 2, 3), keepdims=True)
    z = (z - mean) / jnp.sqrt(var + eps)
    z = z * gamma.reshape(1, -1, 1, 1) + beta.reshape(1, -1, 1, 1)
    return jnp.maximum(z, 0.0)


# ----------------------------------- Main ------------------------------------


if __name__ == "__main__":
    N, CIN, COUT, H, W = 2, 4, 8, 16, 16
    K, DIL, PAD = 3, 1, 1

    key = jax.random.PRNGKey(0)
    k_x, k_wd, k_wp = jax.random.split(key, 3)

    x = jax.random.normal(k_x, (N, CIN, H, W), jnp.float32)

    # kaiming_normal-style deterministic init (matches nn.init.kaiming_normal)
    wd = jax.random.normal(k_wd, (CIN, 1, K, K), jnp.float32) * jnp.sqrt(2.0 / (K * K))
    wp = jax.random.normal(k_wp, (COUT, CIN, 1, 1), jnp.float32) * jnp.sqrt(2.0 / CIN)
    # BatchNorm2d default init: weight=1, bias=0
    gamma = jnp.ones((COUT,), jnp.float32)
    beta = jnp.zeros((COUT,), jnp.float32)

    out = sep_conv_bn(x, wd, wp, gamma, beta,
                      kernel_size=K, dilation=DIL, padding=PAD)
    out = jax.block_until_ready(out)

    ref = _reference(x, wd, wp, gamma, beta,
                     kernel_size=K, dilation=DIL, padding=PAD)

    assert out.shape == (N, COUT, H, W)
    assert jnp.allclose(out, ref, rtol=2e-3, atol=2e-3), (
        float(jnp.max(jnp.abs(out - ref))))

    print("KERNEL_OK")
</pallas_src>

<mosaic_0001>
module attributes {stable_mosaic.version = 11 : i64} {
  func.func @_sepconv_bn_kernel(%arg0: i32, %arg1: memref<4x512xf32, #tpu.memory_space<vmem>>, %arg2: memref<9x512xf32, #tpu.memory_space<vmem>>, %arg3: memref<4x9xf32, #tpu.memory_space<vmem>>, %arg4: memref<8x4xf32, #tpu.memory_space<vmem>>, %arg5: memref<8x2xf32, #tpu.memory_space<vmem>>, %arg6: memref<8x512xf32, #tpu.memory_space<vmem>>) attributes {dimension_semantics = [#tpu.dimension_semantics<parallel>], iteration_bounds = array<i64: 1>, scalar_prefetch = 0 : i64, scratch_operands = 0 : i64, tpu.core_type = #tpu.core_type<tc>, window_params = [{pipeline_mode = #tpu.pipeline_mode<synchronous>, transform_indices = @transform_0, window_bounds = array<i64: 4, 512>}, {pipeline_mode = #tpu.pipeline_mode<synchronous>, transform_indices = @transform_1, window_bounds = array<i64: 9, 512>}, {pipeline_mode = #tpu.pipeline_mode<synchronous>, transform_indices = @transform_2, window_bounds = array<i64: 4, 9>}, {transform_indices = @transform_3, window_bounds = array<i64: 8, 4>}, {transform_indices = @transform_4, window_bounds = array<i64: 8, 2>}, {transform_indices = @transform_5, window_bounds = array<i64: 8, 512>}]} {
    %c0 = arith.constant 0 : index
    %c0_0 = arith.constant 0 : index
    %0 = vector.load %arg1[%c0, %c0_0] : memref<4x512xf32, #tpu.memory_space<vmem>>, vector<4x512xf32>
    %c0_1 = arith.constant 0 : index
    %c0_2 = arith.constant 0 : index
    %1 = vector.load %arg3[%c0_1, %c0_2] : memref<4x9xf32, #tpu.memory_space<vmem>>, vector<4x9xf32>
    %c0_3 = arith.constant 0 : index
    %c0_4 = arith.constant 0 : index
    %2 = vector.load %arg2[%c0_3, %c0_4] : memref<9x512xf32, #tpu.memory_space<vmem>>, vector<9x512xf32>
    %cst = arith.constant 0.000000e+00 : f32
    %3 = vector.broadcast %cst : f32 to vector<4x512xf32>
    %4 = vector.extract_strided_slice %1 {offsets = [0, 0], sizes = [4, 1], strides = [1, 1]} : vector<4x9xf32> to vector<4x1xf32>
    %c17_i32 = arith.constant 17 : i32
    %5 = tpu.dynamic_rotate %0 by %c17_i32 dim 1 : vector<4x512xf32>, i32 -> vector<4x512xf32>
    %6 = vector.extract_strided_slice %2 {offsets = [0, 0], sizes = [1, 512], strides = [1, 1]} : vector<9x512xf32> to vector<1x512xf32>
    %7 = vector.broadcast %6 : vector<1x512xf32> to vector<4x512xf32>
    %8 = arith.mulf %5, %7 : vector<4x512xf32>
    %9 = vector.broadcast %4 : vector<4x1xf32> to vector<4x512xf32>
    %10 = arith.mulf %8, %9 : vector<4x512xf32>
    %11 = arith.addf %3, %10 : vector<4x512xf32>
    %12 = vector.extract_strided_slice %1 {offsets = [0, 1], sizes = [4, 1], strides = [1, 1]} : vector<4x9xf32> to vector<4x1xf32>
    %c16_i32 = arith.constant 16 : i32
    %13 = tpu.dynamic_rotate %0 by %c16_i32 dim 1 : vector<4x512xf32>, i32 -> vector<4x512xf32>
    %14 = vector.extract_strided_slice %2 {offsets = [1, 0], sizes = [1, 512], strides = [1, 1]} : vector<9x512xf32> to vector<1x512xf32>
    %15 = vector.broadcast %14 : vector<1x512xf32> to vector<4x512xf32>
    %16 = arith.mulf %13, %15 : vector<4x512xf32>
    %17 = vector.broadcast %12 : vector<4x1xf32> to vector<4x512xf32>
    %18 = arith.mulf %16, %17 : vector<4x512xf32>
    %19 = arith.addf %11, %18 : vector<4x512xf32>
    %20 = vector.extract_strided_slice %1 {offsets = [0, 2], sizes = [4, 1], strides = [1, 1]} : vector<4x9xf32> to vector<4x1xf32>
    %c15_i32 = arith.constant 15 : i32
    %21 = tpu.dynamic_rotate %0 by %c15_i32 dim 1 : vector<4x512xf32>, i32 -> vector<4x512xf32>
    %22 = vector.extract_strided_slice %2 {offsets = [2, 0], sizes = [1, 512], strides = [1, 1]} : vector<9x512xf32> to vector<1x512xf32>
    %23 = vector.broadcast %22 : vector<1x512xf32> to vector<4x512xf32>
    %24 = arith.mulf %21, %23 : vector<4x512xf32>
    %25 = vector.broadcast %20 : vector<4x1xf32> to vector<4x512xf32>
    %26 = arith.mulf %24, %25 : vector<4x512xf32>
    %27 = arith.addf %19, %26 : vector<4x512xf32>
    %28 = vector.extract_strided_slice %1 {offsets = [0, 3], sizes = [4, 1], strides = [1, 1]} : vector<4x9xf32> to vector<4x1xf32>
    %c1_i32 = arith.constant 1 : i32
    %29 = tpu.dynamic_rotate %0 by %c1_i32 dim 1 : vector<4x512xf32>, i32 -> vector<4x512xf32>
    %30 = vector.extract_strided_slice %2 {offsets = [3, 0], sizes = [1, 512], strides = [1, 1]} : vector<9x512xf32> to vector<1x512xf32>
    %31 = vector.broadcast %30 : vector<1x512xf32> to vector<4x512xf32>
    %32 = arith.mulf %29, %31 : vector<4x512xf32>
    %33 = vector.broadcast %28 : vector<4x1xf32> to vector<4x512xf32>
    %34 = arith.mulf %32, %33 : vector<4x512xf32>
    %35 = arith.addf %27, %34 : vector<4x512xf32>
    %36 = vector.extract_strided_slice %1 {offsets = [0, 4], sizes = [4, 1], strides = [1, 1]} : vector<4x9xf32> to vector<4x1xf32>
    %37 = vector.broadcast %36 : vector<4x1xf32> to vector<4x512xf32>
    %38 = arith.mulf %0, %37 : vector<4x512xf32>
    %39 = arith.addf %35, %38 : vector<4x512xf32>
    %40 = vector.extract_strided_slice %1 {offsets = [0, 5], sizes = [4, 1], strides = [1, 1]} : vector<4x9xf32> to vector<4x1xf32>
    %c511_i32 = arith.constant 511 : i32
    %41 = tpu.dynamic_rotate %0 by %c511_i32 dim 1 : vector<4x512xf32>, i32 -> vector<4x512xf32>
    %42 = vector.extract_strided_slice %2 {offsets = [5, 0], sizes = [1, 512], strides = [1, 1]} : vector<9x512xf32> to vector<1x512xf32>
    %43 = vector.broadcast %42 : vector<1x512xf32> to vector<4x512xf32>
    %44 = arith.mulf %41, %43 : vector<4x512xf32>
    %45 = vector.broadcast %40 : vector<4x1xf32> to vector<4x512xf32>
    %46 = arith.mulf %44, %45 : vector<4x512xf32>
    %47 = arith.addf %39, %46 : vector<4x512xf32>
    %48 = vector.extract_strided_slice %1 {offsets = [0, 6], sizes = [4, 1], strides = [1, 1]} : vector<4x9xf32> to vector<4x1xf32>
    %c497_i32 = arith.constant 497 : i32
    %49 = tpu.dynamic_rotate %0 by %c497_i32 dim 1 : vector<4x512xf32>, i32 -> vector<4x512xf32>
    %50 = vector.extract_strided_slice %2 {offsets = [6, 0], sizes = [1, 512], strides = [1, 1]} : vector<9x512xf32> to vector<1x512xf32>
    %51 = vector.broadcast %50 : vector<1x512xf32> to vector<4x512xf32>
    %52 = arith.mulf %49, %51 : vector<4x512xf32>
    %53 = vector.broadcast %48 : vector<4x1xf32> to vector<4x512xf32>
    %54 = arith.mulf %52, %53 : vector<4x512xf32>
    %55 = arith.addf %47, %54 : vector<4x512xf32>
    %56 = vector.extract_strided_slice %1 {offsets = [0, 7], sizes = [4, 1], strides = [1, 1]} : vector<4x9xf32> to vector<4x1xf32>
    %c496_i32 = arith.constant 496 : i32
    %57 = tpu.dynamic_rotate %0 by %c496_i32 dim 1 : vector<4x512xf32>, i32 -> vector<4x512xf32>
    %58 = vector.extract_strided_slice %2 {offsets = [7, 0], sizes = [1, 512], strides = [1, 1]} : vector<9x512xf32> to vector<1x512xf32>
    %59 = vector.broadcast %58 : vector<1x512xf32> to vector<4x512xf32>
    %60 = arith.mulf %57, %59 : vector<4x512xf32>
    %61 = vector.broadcast %56 : vector<4x1xf32> to vector<4x512xf32>
    %62 = arith.mulf %60, %61 : vector<4x512xf32>
    %63 = arith.addf %55, %62 : vector<4x512xf32>
    %64 = vector.extract_strided_slice %1 {offsets = [0, 8], sizes = [4, 1], strides = [1, 1]} : vector<4x9xf32> to vector<4x1xf32>
    %c495_i32 = arith.constant 495 : i32
    %65 = tpu.dynamic_rotate %0 by %c495_i32 dim 1 : vector<4x512xf32>, i32 -> vector<4x512xf32>
    %66 = vector.extract_strided_slice %2 {offsets = [8, 0], sizes = [1, 512], strides = [1, 1]} : vector<9x512xf32> to vector<1x512xf32>
    %67 = vector.broadcast %66 : vector<1x512xf32> to vector<4x512xf32>
    %68 = arith.mulf %65, %67 : vector<4x512xf32>
    %69 = vector.broadcast %64 : vector<4x1xf32> to vector<4x512xf32>
    %70 = arith.mulf %68, %69 : vector<4x512xf32>
    %71 = arith.addf %63, %70 : vector<4x512xf32>
    %cst_5 = arith.constant 0.000000e+00 : f32
    %72 = vector.broadcast %cst_5 : f32 to vector<4x512xf32>
    %73 = arith.maximumf %71, %72 : vector<4x512xf32>
    %c0_6 = arith.constant 0 : index
    %c0_7 = arith.constant 0 : index
    %74 = vector.load %arg4[%c0_6, %c0_7] : memref<8x4xf32, #tpu.memory_space<vmem>>, vector<8x4xf32>
    %75 = vector.extract_strided_slice %74 {offsets = [0, 0], sizes = [8, 1], strides = [1, 1]} : vector<8x4xf32> to vector<8x1xf32>
    %76 = vector.extract_strided_slice %73 {offsets = [0, 0], sizes = [1, 512], strides = [1, 1]} : vector<4x512xf32> to vector<1x512xf32>
    %77 = vector.broadcast %75 : vector<8x1xf32> to vector<8x512xf32>
    %78 = vector.broadcast %76 : vector<1x512xf32> to vector<8x512xf32>
    %79 = arith.mulf %77, %78 : vector<8x512xf32>
    %80 = vector.extract_strided_slice %74 {offsets = [0, 1], sizes = [8, 1], strides = [1, 1]} : vector<8x4xf32> to vector<8x1xf32>
    %81 = vector.extract_strided_slice %73 {offsets = [1, 0], sizes = [1, 512], strides = [1, 1]} : vector<4x512xf32> to vector<1x512xf32>
    %82 = vector.broadcast %80 : vector<8x1xf32> to vector<8x512xf32>
    %83 = vector.broadcast %81 : vector<1x512xf32> to vector<8x512xf32>
    %84 = arith.mulf %82, %83 : vector<8x512xf32>
    %85 = arith.addf %79, %84 : vector<8x512xf32>
    %86 = vector.extract_strided_slice %74 {offsets = [0, 2], sizes = [8, 1], strides = [1, 1]} : vector<8x4xf32> to vector<8x1xf32>
    %87 = vector.extract_strided_slice %73 {offsets = [2, 0], sizes = [1, 512], strides = [1, 1]} : vector<4x512xf32> to vector<1x512xf32>
    %88 = vector.broadcast %86 : vector<8x1xf32> to vector<8x512xf32>
    %89 = vector.broadcast %87 : vector<1x512xf32> to vector<8x512xf32>
    %90 = arith.mulf %88, %89 : vector<8x512xf32>
    %91 = arith.addf %85, %90 : vector<8x512xf32>
    %92 = vector.extract_strided_slice %74 {offsets = [0, 3], sizes = [8, 1], strides = [1, 1]} : vector<8x4xf32> to vector<8x1xf32>
    %93 = vector.extract_strided_slice %73 {offsets = [3, 0], sizes = [1, 512], strides = [1, 1]} : vector<4x512xf32> to vector<1x512xf32>
    %94 = vector.broadcast %92 : vector<8x1xf32> to vector<8x512xf32>
    %95 = vector.broadcast %93 : vector<1x512xf32> to vector<8x512xf32>
    %96 = arith.mulf %94, %95 : vector<8x512xf32>
    %97 = arith.addf %91, %96 : vector<8x512xf32>
    %c0_8 = arith.constant 0 : index
    %c0_9 = arith.constant 0 : index
    %98 = vector.load %arg5[%c0_8, %c0_9] : memref<8x2xf32, #tpu.memory_space<vmem>>, vector<8x2xf32>
    %99 = vector.extract_strided_slice %98 {offsets = [0, 0], sizes = [8, 1], strides = [1, 1]} : vector<8x2xf32> to vector<8x1xf32>
    %100 = vector.extract_strided_slice %98 {offsets = [0, 1], sizes = [8, 1], strides = [1, 1]} : vector<8x2xf32> to vector<8x1xf32>
    %cst_10 = arith.constant dense<0.000000e+00> : vector<8xf32>
    %101 = vector.multi_reduction <add>, %97, %cst_10 [1] : vector<8x512xf32> to vector<8xf32>
    %102 = vector.shape_cast %101 : vector<8xf32> to vector<8x1xf32>
    %cst_11 = arith.constant 0.001953125 : f32
    %103 = vector.broadcast %cst_11 : f32 to vector<8x1xf32>
    %104 = arith.mulf %102, %103 : vector<8x1xf32>
    %105 = vector.broadcast %104 : vector<8x1xf32> to vector<8x512xf32>
    %106 = arith.subf %97, %105 : vector<8x512xf32>
    %107 = arith.mulf %106, %106 : vector<8x512xf32>
    %cst_12 = arith.constant dense<0.000000e+00> : vector<8xf32>
    %108 = vector.multi_reduction <add>, %107, %cst_12 [1] : vector<8x512xf32> to vector<8xf32>
    %109 = vector.shape_cast %108 : vector<8xf32> to vector<8x1xf32>
    %cst_13 = arith.constant 0.001953125 : f32
    %110 = vector.broadcast %cst_13 : f32 to vector<8x1xf32>
    %111 = arith.mulf %109, %110 : vector<8x1xf32>
    %cst_14 = arith.constant 9.99999974E-6 : f32
    %112 = vector.broadcast %cst_14 : f32 to vector<8x1xf32>
    %113 = arith.addf %111, %112 : vector<8x1xf32>
    %114 = math.rsqrt %113 : vector<8x1xf32>
    %115 = arith.mulf %99, %114 : vector<8x1xf32>
    %116 = vector.broadcast %115 : vector<8x1xf32> to vector<8x512xf32>
    %117 = arith.mulf %106, %116 : vector<8x512xf32>
    %118 = vector.broadcast %100 : vector<8x1xf32> to vector<8x512xf32>
    %119 = arith.addf %117, %118 : vector<8x512xf32>
    %cst_15 = arith.constant 0.000000e+00 : f32
    %120 = vector.broadcast %cst_15 : f32 to vector<8x512xf32>
    %121 = arith.maximumf %119, %120 : vector<8x512xf32>
    %c0_16 = arith.constant 0 : index
    %c0_17 = arith.constant 0 : index
    %122 = vector.load %arg6[%c0_16, %c0_17] : memref<8x512xf32, #tpu.memory_space<vmem>>, vector<8x512xf32>
    tpu.vector_store %arg6[%c0_16, %c0_17], %121 {strides = array<i32>} : memref<8x512xf32, #tpu.memory_space<vmem>>, vector<8x512xf32>,
    return
  }
  func.func @transform_0(%arg0: i32) -> (i32, i32) {
    %c0_i32 = arith.constant 0 : i32
    %c0_i32_0 = arith.constant 0 : i32
    %c0_i32_1 = arith.constant 0 : i32
    return %c0_i32, %c0_i32_0 : i32, i32
  }
  func.func @transform_1(%arg0: i32) -> (i32, i32) {
    %c0_i32 = arith.constant 0 : i32
    %c0_i32_0 = arith.constant 0 : i32
    %c0_i32_1 = arith.constant 0 : i32
    return %c0_i32, %c0_i32_0 : i32, i32
  }
  func.func @transform_2(%arg0: i32) -> (i32, i32) {
    %c0_i32 = arith.constant 0 : i32
    %c0_i32_0 = arith.constant 0 : i32
    %c0_i32_1 = arith.constant 0 : i32
    return %c0_i32, %c0_i32_0 : i32, i32
  }
  func.func @transform_3(%arg0: i32) -> (i32, i32) {
    %c0_i32 = arith.constant 0 : i32
    %c0_i32_0 = arith.constant 0 : i32
    return %arg0, %c0_i32 : i32, i32
  }
  func.func @transform_4(%arg0: i32) -> (i32, i32) {
    %c0_i32 = arith.constant 0 : i32
    %c0_i32_0 = arith.constant 0 : i32
    return %arg0, %c0_i32 : i32, i32
  }
  func.func @transform_5(%arg0: i32) -> (i32, i32) {
    %c0_i32 = arith.constant 0 : i32
    %c0_i32_0 = arith.constant 0 : i32
    return %arg0, %c0_i32 : i32, i32
  }
}

</mosaic_0001>

<llo_original>
// kernel: tpu_custom_call.1
$region0: #{tpu_custom_call.1}
  #allocation0 [shape = 'u32[]', space=smem, size = 0x4, offset = 0x4, fixed_abs, tag = 'smem constant byte address 0x4 - core index']
  #allocation1 [shape = 'u32[144,128]{1,0:T(1,128)}', space=vmem, size = 0x12000, scoped, tag = 'internal scratch']
  %s0 = inlined_call_operand.vmem [shape: f32[4,512], index: 0, kind: input, shape index: {}]
  %s1 = inlined_call_operand.hbm [shape: f32[9,512], index: 1, kind: input, shape index: {}]
  %s2 = inlined_call_operand.vmem [shape: f32[4,9], index: 2, kind: input, shape index: {}]
  %s3 = inlined_call_operand.vmem [shape: f32[8,4], index: 3, kind: input, shape index: {}]
  %s4 = inlined_call_operand.vmem [shape: f32[8,2], index: 4, kind: input, shape index: {}]
  %s5 = inlined_call_operand.hbm [shape: f32[8,512], index: 5, kind: output, shape index: {}]
  %s6 = sld [smem:[#allocation0]]
  $region34: #{tpu_custom_call.1} parent=0
    _
  %s8 = ssub.s32 1, %s6
  %s9 = scalar_select 0, %s8, %s6
  $region1: #{tpu_custom_call.1} parent=0
    #allocation2 [shape = 'u8[32768]{0}', space=vmem, size = 0x8000, scoped, tag = 'input window, operand 1, single buffered']
    #allocation3 [shape = 's32[1]{0}', space=sflag, size = 0x4, scoped, tag = 'scoped memory for tpu_custom_call.1']
    #allocation4 [shape = 's32[1]{0}', space=sflag, size = 0x4, scoped, tag = 'scoped memory for tpu_custom_call.1']
    #allocation5 [shape = 'u8[16384]{0}', space=vmem, size = 0x4000, scoped, tag = 'output window, operand 0, single buffered']
    %10 = vsyncpa [#allocation3], 0
    %11 = vsyncpa [#allocation4], 0
    // Predicated region
    $region2: #{tpu_custom_call.1} parent=1 // pred_check
      _
    $region3: #{tpu_custom_call.1} parent=1 // pred_check_branch
      %13 = sbr.rel (0) target = $region5
    $region4: #{tpu_custom_call.1} parent=1 // pred_region
      _
    $region5: #{tpu_custom_call.1} parent=1 // pred_fallthru
      _
    // Predicated region
    $region6: #{tpu_custom_call.1} parent=1 // pred_check
      _
    $region7: #{tpu_custom_call.1} parent=1 // pred_check_branch
      %15 = sbr.rel (0) target = $region9
    $region8: #{tpu_custom_call.1} parent=1 // pred_region
      %s17 = ssub.s32 1024, 1024
      %18 = vsyncadd [#allocation3], %s17
      %s19 = sshll.u32 [#allocation2], 4
      %s20 = int_to_ptr.vmem [resolvable:$true] %s19
      %25 = dma.hbm_to_vmem [thread:$0]  %s1, 1024, %s20, [#allocation3], 512, 512, 32
    $region9: #{tpu_custom_call.1} parent=1 // pred_fallthru
      _
    // Predicated region
    $region10: #{tpu_custom_call.1} parent=1 // pred_check
      _
    $region11: #{tpu_custom_call.1} parent=1 // pred_check_branch
      %27 = sbr.rel (0) target = $region13
    $region12: #{tpu_custom_call.1} parent=1 // pred_region
      _
    $region13: #{tpu_custom_call.1} parent=1 // pred_fallthru
      _
    // Predicated region
    $region14: #{tpu_custom_call.1} parent=1 // pred_check
      _
    $region15: #{tpu_custom_call.1} parent=1 // pred_check_branch
      %29 = sbr.rel (0) target = $region17
    $region16: #{tpu_custom_call.1} parent=1 // pred_region
      _
    $region17: #{tpu_custom_call.1} parent=1 // pred_fallthru
      _
    // Predicated region
    $region18: #{tpu_custom_call.1} parent=1 // pred_check
      _
    $region19: #{tpu_custom_call.1} parent=1 // pred_check_branch
      %31 = sbr.rel (0) target = $region21
    $region20: #{tpu_custom_call.1} parent=1 // pred_region
      _
    $region21: #{tpu_custom_call.1} parent=1 // pred_fallthru
      _
    // Predicated region
    $region22: #{tpu_custom_call.1} parent=1 // pred_check
      _
    $region23: #{tpu_custom_call.1} parent=1 // pred_check_branch
      %33 = sbr.rel (0) target = $region25
    $region24: #{tpu_custom_call.1} parent=1 // pred_region
      %34 = dma.done [#allocation3], 1024
    $region25: #{tpu_custom_call.1} parent=1 // pred_fallthru
      _
    %v35 = vld [vmem:[%s0] sm:$0xff]
    %v36 = vld [vmem:[%s0 + $0x8] sm:$0xff]
    %v37 = vld [vmem:[%s2] sm:$0xf]
    %v38 = vld [vmem:[#allocation2] sm:$0xff]
    %v39 = vld [vmem:[#allocation2 + $0x8] sm:$0xff]
    %v40 = vld [vmem:[#allocation2 + $0x10] sm:$0xff]
    %v41 = vld [vmem:[#allocation2 + $0x18] sm:$0xff]
    %v42 = vld [vmem:[#allocation2 + $0x20] sm:$0x1]
    %v43 = vld [vmem:[#allocation2 + $0x28] sm:$0x1]
    %v44 = vld [vmem:[#allocation2 + $0x30] sm:$0x1]
    %v45 = vld [vmem:[#allocation2 + $0x38] sm:$0x1]
    %v48 = vcombine.high %v35, %v35
    %v49 = vcombine.high %v36, %v36
    %52 = vrot.lane.b32.xlu0 %v35, 17
    %v53 = vpop.permute.xlu0 %52
    %54 = vrot.lane.b32.xlu0 %v48, 17
    %v55 = vpop.permute.xlu0 %54
    %56 = vrot.lane.b32.xlu0 %v36, 17
    %v57 = vpop.permute.xlu0 %56
    %58 = vrot.lane.b32.xlu0 %v49, 17
    %v59 = vpop.permute.xlu0 %58
    %v60 = vlaneseq
    %v61 = vand.u32 %v60, 127
    %vm62 = vcmp.lt.s32.totalorder %v61, 17
    %v63 = vsel %vm62, %v57, %v59
    %v64 = vsel %vm62, %v55, %v57
    %v65 = vsel %vm62, %v53, %v55
    %v66 = vsel %vm62, %v59, %v53
    %v67 = vlaneseq
    %v68 = vshrl.u32 %v67, 7
    %v69 = vsub.s32 0, %v68
    %v70 = vrot.slane %v38, %v69
    %v71 = vlaneseq
    %v72 = vshrl.u32 %v71, 7
    %v73 = vsub.s32 0, %v72
    %v74 = vrot.slane %v39, %v73
    %v75 = vlaneseq
    %v76 = vshrl.u32 %v75, 7
    %v77 = vsub.s32 0, %v76
    %v78 = vrot.slane %v40, %v77
    %v79 = vlaneseq
    %v80 = vshrl.u32 %v79, 7
    %v81 = vsub.s32 0, %v80
    %v82 = vrot.slane %v41, %v81
    %v83 = vmul.f32 %v66, %v70
    %v84 = vmul.f32 %v65, %v74
    %v85 = vmul.f32 %v64, %v78
    %v86 = vmul.f32 %v63, %v82
    %88 = vset.pattern.permute.xlu0 0
    %89 = vperm.xlu0 %88, %v37
    %v90 = vpop.permute.xlu0 %89
    %v92 = vmul.f32 %v83, %v90
    %v93 = vmul.f32 %v84, %v90
    %v94 = vmul.f32 %v85, %v90
    %v95 = vmul.f32 %v86, %v90
    %v96 = vadd.f32 %v92, 0.0
    %v97 = vadd.f32 %v93, 0.0
    %v98 = vadd.f32 %v94, 0.0
    %v99 = vadd.f32 %v95, 0.0
    %100 = vrot.lane.b32.xlu0 %v35, 16
    %v101 = vpop.permute.xlu0 %100
    %102 = vrot.lane.b32.xlu0 %v48, 16
    %v103 = vpop.permute.xlu0 %102
    %104 = vrot.lane.b32.xlu0 %v36, 16
    %v105 = vpop.permute.xlu0 %104
    %106 = vrot.lane.b32.xlu0 %v49, 16
    %v107 = vpop.permute.xlu0 %106
    %vm108 = vcmp.lt.s32.totalorder %v61, 16
    %v109 = vsel %vm108, %v105, %v107
    %v110 = vsel %vm108, %v103, %v105
    %v111 = vsel %vm108, %v101, %v103
    %v112 = vsel %vm108, %v107, %v101
    %v113 = vlaneseq
    %v114 = vshrl.u32 %v113, 7
    %v115 = vsub.s32 1, %v114
    %v116 = vrot.slane %v38, %v115
    %v117 = vlaneseq
    %v118 = vshrl.u32 %v117, 7
    %v119 = vsub.s32 1, %v118
    %v120 = vrot.slane %v39, %v119
    %v121 = vlaneseq
    %v122 = vshrl.u32 %v121, 7
    %v123 = vsub.s32 1, %v122
    %v124 = vrot.slane %v40, %v123
    %v125 = vlaneseq
    %v126 = vshrl.u32 %v125, 7
    %v127 = vsub.s32 1, %v126
    %v128 = vrot.slane %v41, %v127
    %v129 = vmul.f32 %v112, %v116
    %v130 = vmul.f32 %v111, %v120
    %v131 = vmul.f32 %v110, %v124
    %v132 = vmul.f32 %v109, %v128
    %133 = vset.pattern.permute.xlu0 1
    %134 = vperm.xlu0 %133, %v37
    %v135 = vpop.permute.xlu0 %134
    %v137 = vmul.f32 %v129, %v135
    %v138 = vmul.f32 %v130, %v135
    %v139 = vmul.f32 %v131, %v135
    %v140 = vmul.f32 %v132, %v135
    %v141 = vadd.f32 %v96, %v137
    %v142 = vadd.f32 %v97, %v138
    %v143 = vadd.f32 %v98, %v139
    %v144 = vadd.f32 %v99, %v140
    %145 = vrot.lane.b32.xlu0 %v35, 15
    %v146 = vpop.permute.xlu0 %145
    %147 = vrot.lane.b32.xlu0 %v48, 15
    %v148 = vpop.permute.xlu0 %147
    %149 = vrot.lane.b32.xlu0 %v36, 15
    %v150 = vpop.permute.xlu0 %149
    %151 = vrot.lane.b32.xlu0 %v49, 15
    %v152 = vpop.permute.xlu0 %151
    %vm153 = vcmp.lt.s32.totalorder %v61, 15
    %v154 = vsel %vm153, %v150, %v152
    %v155 = vsel %vm153, %v148, %v150
    %v156 = vsel %vm153, %v146, %v148
    %v157 = vsel %vm153, %v152, %v146
    %v158 = vlaneseq
    %v159 = vshrl.u32 %v158, 7
    %v160 = vsub.s32 2, %v159
    %v161 = vrot.slane %v38, %v160
    %v162 = vlaneseq
    %v163 = vshrl.u32 %v162, 7
    %v164 = vsub.s32 2, %v163
    %v165 = vrot.slane %v39, %v164
    %v166 = vlaneseq
    %v167 = vshrl.u32 %v166, 7
    %v168 = vsub.s32 2, %v167
    %v169 = vrot.slane %v40, %v168
    %v170 = vlaneseq
    %v171 = vshrl.u32 %v170, 7
    %v172 = vsub.s32 2, %v171
    %v173 = vrot.slane %v41, %v172
    %v174 = vmul.f32 %v157, %v161
    %v175 = vmul.f32 %v156, %v165
    %v176 = vmul.f32 %v155, %v169
    %v177 = vmul.f32 %v154, %v173
    %178 = vset.pattern.permute.xlu0 2
    %179 = vperm.xlu0 %178, %v37
    %v180 = vpop.permute.xlu0 %179
    %v182 = vmul.f32 %v174, %v180
    %v183 = vmul.f32 %v175, %v180
    %v184 = vmul.f32 %v176, %v180
    %v185 = vmul.f32 %v177, %v180
    %v186 = vadd.f32 %v141, %v182
    %v187 = vadd.f32 %v142, %v183
    %v188 = vadd.f32 %v143, %v184
    %v189 = vadd.f32 %v144, %v185
    %190 = vrot.lane.b32.xlu0 %v35, 1
    %v191 = vpop.permute.xlu0 %190
    %192 = vrot.lane.b32.xlu0 %v48, 1
    %v193 = vpop.permute.xlu0 %192
    %194 = vrot.lane.b32.xlu0 %v36, 1
    %v195 = vpop.permute.xlu0 %194
    %196 = vrot.lane.b32.xlu0 %v49, 1
    %v197 = vpop.permute.xlu0 %196
    %vm198 = vcmp.lt.s32.totalorder %v61, 1
    %v199 = vsel %vm198, %v195, %v197
    %v200 = vsel %vm198, %v193, %v195
    %v201 = vsel %vm198, %v191, %v193
    %v202 = vsel %vm198, %v197, %v191
    %v203 = vlaneseq
    %v204 = vshrl.u32 %v203, 7
    %v205 = vsub.s32 3, %v204
    %v206 = vrot.slane %v38, %v205
    %v207 = vlaneseq
    %v208 = vshrl.u32 %v207, 7
    %v209 = vsub.s32 3, %v208
    %v210 = vrot.slane %v39, %v209
    %v211 = vlaneseq
    %v212 = vshrl.u32 %v211, 7
    %v213 = vsub.s32 3, %v212
    %v214 = vrot.slane %v40, %v213
    %v215 = vlaneseq
    %v216 = vshrl.u32 %v215, 7
    %v217 = vsub.s32 3, %v216
    %v218 = vrot.slane %v41, %v217
    %v219 = vmul.f32 %v202, %v206
    %v220 = vmul.f32 %v201, %v210
    %v221 = vmul.f32 %v200, %v214
    %v222 = vmul.f32 %v199, %v218
    %223 = vset.pattern.permute.xlu0 3
    %224 = vperm.xlu0 %223, %v37
    %v225 = vpop.permute.xlu0 %224
    %v227 = vmul.f32 %v219, %v225
    %v228 = vmul.f32 %v220, %v225
    %v229 = vmul.f32 %v221, %v225
    %v230 = vmul.f32 %v222, %v225
    %v231 = vadd.f32 %v186, %v227
    %v232 = vadd.f32 %v187, %v228
    %v233 = vadd.f32 %v188, %v229
    %v234 = vadd.f32 %v189, %v230
    %235 = vset.pattern.permute.xlu0 4
    %236 = vperm.xlu0 %235, %v37
    %v237 = vpop.permute.xlu0 %236
    %v239 = vunpack.c.l.s4 839922192
    %v240 = vunpack.c.0.s8 %v239
    %v241 = vlaneseq
    %v242 = vshrl.u32 %v241, 7
    %v243 = vsub.s32 %v240, %v242
    %v244 = vrot.slane %v237, %v243
    %v246 = vmul.f32 %v35, %v244
    %v247 = vmul.f32 %v36, %v244
    %v250 = vcombine.high %v246, %v246
    %v251 = vcombine.high %v247, %v247
    %v254 = vadd.f32 %v231, %v246
    %v255 = vadd.f32 %v232, %v250
    %v256 = vadd.f32 %v233, %v247
    %v257 = vadd.f32 %v234, %v251
    %258 = vrot.lane.b32.xlu0 %v35, 127
    %v259 = vpop.permute.xlu0 %258
    %260 = vrot.lane.b32.xlu0 %v48, 127
    %v261 = vpop.permute.xlu0 %260
    %262 = vrot.lane.b32.xlu0 %v36, 127
    %v263 = vpop.permute.xlu0 %262
    %264 = vrot.lane.b32.xlu0 %v49, 127
    %v265 = vpop.permute.xlu0 %264
    %vm266 = vcmp.lt.s32.totalorder %v61, 127
    %v267 = vsel %vm266, %v263, %v265
    %v268 = vsel %vm266, %v261, %v263
    %v269 = vsel %vm266, %v259, %v261
    %v270 = vsel %vm266, %v265, %v259
    %v271 = vlaneseq
    %v272 = vshrl.u32 %v271, 7
    %v273 = vsub.s32 5, %v272
    %v274 = vrot.slane %v38, %v273
    %v275 = vlaneseq
    %v276 = vshrl.u32 %v275, 7
    %v277 = vsub.s32 5, %v276
    %v278 = vrot.slane %v39, %v277
    %v279 = vlaneseq
    %v280 = vshrl.u32 %v279, 7
    %v281 = vsub.s32 5, %v280
    %v282 = vrot.slane %v40, %v281
    %v283 = vlaneseq
    %v284 = vshrl.u32 %v283, 7
    %v285 = vsub.s32 5, %v284
    %v286 = vrot.slane %v41, %v285
    %v287 = vmul.f32 %v269, %v274
    %v288 = vmul.f32 %v268, %v278
    %v289 = vmul.f32 %v267, %v282
    %v290 = vmul.f32 %v270, %v286
    %291 = vset.pattern.permute.xlu0 5
    %292 = vperm.xlu0 %291, %v37
    %v293 = vpop.permute.xlu0 %292
    %v295 = vmul.f32 %v287, %v293
    %v296 = vmul.f32 %v288, %v293
    %v297 = vmul.f32 %v289, %v293
    %v298 = vmul.f32 %v290, %v293
    %v299 = vadd.f32 %v254, %v295
    %v300 = vadd.f32 %v255, %v296
    %v301 = vadd.f32 %v256, %v297
    %v302 = vadd.f32 %v257, %v298
    %303 = vrot.lane.b32.xlu0 %v35, 113
    %v304 = vpop.permute.xlu0 %303
    %305 = vrot.lane.b32.xlu0 %v48, 113
    %v306 = vpop.permute.xlu0 %305
    %307 = vrot.lane.b32.xlu0 %v36, 113
    %v308 = vpop.permute.xlu0 %307
    %309 = vrot.lane.b32.xlu0 %v49, 113
    %v310 = vpop.permute.xlu0 %309
    %vm311 = vcmp.lt.s32.totalorder %v61, 113
    %v312 = vsel %vm311, %v308, %v310
    %v313 = vsel %vm311, %v306, %v308
    %v314 = vsel %vm311, %v304, %v306
    %v315 = vsel %vm311, %v310, %v304
    %v316 = vlaneseq
    %v317 = vshrl.u32 %v316, 7
    %v318 = vsub.s32 6, %v317
    %v319 = vrot.slane %v38, %v318
    %v320 = vlaneseq
    %v321 = vshrl.u32 %v320, 7
    %v322 = vsub.s32 6, %v321
    %v323 = vrot.slane %v39, %v322
    %v324 = vlaneseq
    %v325 = vshrl.u32 %v324, 7
    %v326 = vsub.s32 6, %v325
    %v327 = vrot.slane %v40, %v326
    %v328 = vlaneseq
    %v329 = vshrl.u32 %v328, 7
    %v330 = vsub.s32 6, %v329
    %v331 = vrot.slane %v41, %v330
    %v332 = vmul.f32 %v314, %v319
    %v333 = vmul.f32 %v313, %v323
    %v334 = vmul.f32 %v312, %v327
    %v335 = vmul.f32 %v315, %v331
    %336 = vset.pattern.permute.xlu0 6
    %337 = vperm.xlu0 %336, %v37
    %v338 = vpop.permute.xlu0 %337
    %v340 = vmul.f32 %v332, %v338
    %v341 = vmul.f32 %v333, %v338
    %v342 = vmul.f32 %v334, %v338
    %v343 = vmul.f32 %v335, %v338
    %v344 = vadd.f32 %v299, %v340
    %v345 = vadd.f32 %v300, %v341
    %v346 = vadd.f32 %v301, %v342
    %v347 = vadd.f32 %v302, %v343
    %348 = vrot.lane.b32.xlu0 %v35, 112
    %v349 = vpop.permute.xlu0 %348
    %350 = vrot.lane.b32.xlu0 %v48, 112
    %v351 = vpop.permute.xlu0 %350
    %352 = vrot.lane.b32.xlu0 %v36, 112
    %v353 = vpop.permute.xlu0 %352
    %354 = vrot.lane.b32.xlu0 %v49, 112
    %v355 = vpop.permute.xlu0 %354
    %vm356 = vcmp.lt.s32.totalorder %v61, 112
    %v357 = vsel %vm356, %v353, %v355
    %v358 = vsel %vm356, %v351, %v353
    %v359 = vsel %vm356, %v349, %v351
    %v360 = vsel %vm356, %v355, %v349
    %v361 = vlaneseq
    %v362 = vshrl.u32 %v361, 7
    %v363 = vsub.s32 7, %v362
    %v364 = vrot.slane %v38, %v363
    %v365 = vlaneseq
    %v366 = vshrl.u32 %v365, 7
    %v367 = vsub.s32 7, %v366
    %v368 = vrot.slane %v39, %v367
    %v369 = vlaneseq
    %v370 = vshrl.u32 %v369, 7
    %v371 = vsub.s32 7, %v370
    %v372 = vrot.slane %v40, %v371
    %v373 = vlaneseq
    %v374 = vshrl.u32 %v373, 7
    %v375 = vsub.s32 7, %v374
    %v376 = vrot.slane %v41, %v375
    %v377 = vmul.f32 %v359, %v364
    %v378 = vmul.f32 %v358, %v368
    %v379 = vmul.f32 %v357, %v372
    %v380 = vmul.f32 %v360, %v376
    %381 = vset.pattern.permute.xlu0 7
    %382 = vperm.xlu0 %381, %v37
    %v383 = vpop.permute.xlu0 %382
    %v385 = vmul.f32 %v377, %v383
    %v386 = vmul.f32 %v378, %v383
    %v387 = vmul.f32 %v379, %v383
    %v388 = vmul.f32 %v380, %v383
    %v389 = vadd.f32 %v344, %v385
    %v390 = vadd.f32 %v345, %v386
    %v391 = vadd.f32 %v346, %v387
    %v392 = vadd.f32 %v347, %v388
    %393 = vrot.lane.b32.xlu0 %v35, 111
    %v394 = vpop.permute.xlu0 %393
    %395 = vrot.lane.b32.xlu0 %v48, 111
    %v396 = vpop.permute.xlu0 %395
    %397 = vrot.lane.b32.xlu0 %v36, 111
    %v398 = vpop.permute.xlu0 %397
    %399 = vrot.lane.b32.xlu0 %v49, 111
    %v400 = vpop.permute.xlu0 %399
    %vm401 = vcmp.lt.s32.totalorder %v61, 111
    %v402 = vsel %vm401, %v398, %v400
    %v403 = vsel %vm401, %v396, %v398
    %v404 = vsel %vm401, %v394, %v396
    %v405 = vsel %vm401, %v400, %v394
    %v406 = vlaneseq
    %v407 = vshrl.u32 %v406, 7
    %v408 = vsub.s32 0, %v407
    %v409 = vrot.slane %v42, %v408
    %v410 = vlaneseq
    %v411 = vshrl.u32 %v410, 7
    %v412 = vsub.s32 0, %v411
    %v413 = vrot.slane %v43, %v412
    %v414 = vlaneseq
    %v415 = vshrl.u32 %v414, 7
    %v416 = vsub.s32 0, %v415
    %v417 = vrot.slane %v44, %v416
    %v418 = vlaneseq
    %v419 = vshrl.u32 %v418, 7
    %v420 = vsub.s32 0, %v419
    %v421 = vrot.slane %v45, %v420
    %v422 = vmul.f32 %v404, %v409
    %v423 = vmul.f32 %v403, %v413
    %v424 = vmul.f32 %v402, %v417
    %v425 = vmul.f32 %v405, %v421
    %426 = vset.pattern.permute.xlu0 8
    %427 = vperm.xlu0 %426, %v37
    %v428 = vpop.permute.xlu0 %427
    %v430 = vmul.f32 %v422, %v428
    %v431 = vmul.f32 %v423, %v428
    %v432 = vmul.f32 %v424, %v428
    %v433 = vmul.f32 %v425, %v428
    %v434 = vadd.f32 %v389, %v430
    %v435 = vadd.f32 %v390, %v431
    %v436 = vadd.f32 %v391, %v432
    %v437 = vadd.f32 %v392, %v433
    %v438 = vmax.f32 %v434, 0.0
    %v439 = vmax.f32 %v435, 0.0
    %v440 = vmax.f32 %v436, 0.0
    %v441 = vmax.f32 %v437, 0.0
    %v442 = vld [vmem:[%s3] sm:$0xff]
    %444 = vset.pattern.permute.xlu0 0
    %445 = vperm.xlu0 %444, %v442
    %v446 = vpop.permute.xlu0 %445
    %v448 = vlaneseq
    %v449 = vshrl.u32 %v448, 7
    %v450 = vsub.s32 0, %v449
    %v451 = vrot.slane %v438, %v450
    %v452 = vlaneseq
    %v453 = vshrl.u32 %v452, 7
    %v454 = vsub.s32 0, %v453
    %v455 = vrot.slane %v439, %v454
    %v456 = vlaneseq
    %v457 = vshrl.u32 %v456, 7
    %v458 = vsub.s32 0, %v457
    %v459 = vrot.slane %v440, %v458
    %v460 = vlaneseq
    %v461 = vshrl.u32 %v460, 7
    %v462 = vsub.s32 0, %v461
    %v463 = vrot.slane %v441, %v462
    %v464 = vmul.f32 %v446, %v451
    %v465 = vmul.f32 %v446, %v455
    %v466 = vmul.f32 %v446, %v459
    %v467 = vmul.f32 %v446, %v463
    %468 = vset.pattern.permute.xlu0 1
    %469 = vperm.xlu0 %468, %v442
    %v470 = vpop.permute.xlu0 %469
    %v472 = vlaneseq
    %v473 = vshrl.u32 %v472, 7
    %v474 = vsub.s32 1, %v473
    %v475 = vrot.slane %v438, %v474
    %v476 = vlaneseq
    %v477 = vshrl.u32 %v476, 7
    %v478 = vsub.s32 1, %v477
    %v479 = vrot.slane %v439, %v478
    %v480 = vlaneseq
    %v481 = vshrl.u32 %v480, 7
    %v482 = vsub.s32 1, %v481
    %v483 = vrot.slane %v440, %v482
    %v484 = vlaneseq
    %v485 = vshrl.u32 %v484, 7
    %v486 = vsub.s32 1, %v485
    %v487 = vrot.slane %v441, %v486
    %v488 = vmul.f32 %v470, %v475
    %v489 = vmul.f32 %v470, %v479
    %v490 = vmul.f32 %v470, %v483
    %v491 = vmul.f32 %v470, %v487
    %v492 = vadd.f32 %v464, %v488
    %v493 = vadd.f32 %v465, %v489
    %v494 = vadd.f32 %v466, %v490
    %v495 = vadd.f32 %v467, %v491
    %496 = vset.pattern.permute.xlu0 2
    %497 = vperm.xlu0 %496, %v442
    %v498 = vpop.permute.xlu0 %497
    %v500 = vlaneseq
    %v501 = vshrl.u32 %v500, 7
    %v502 = vsub.s32 2, %v501
    %v503 = vrot.slane %v438, %v502
    %v504 = vlaneseq
    %v505 = vshrl.u32 %v504, 7
    %v506 = vsub.s32 2, %v505
    %v507 = vrot.slane %v439, %v506
    %v508 = vlaneseq
    %v509 = vshrl.u32 %v508, 7
    %v510 = vsub.s32 2, %v509
    %v511 = vrot.slane %v440, %v510
    %v512 = vlaneseq
    %v513 = vshrl.u32 %v512, 7
    %v514 = vsub.s32 2, %v513
    %v515 = vrot.slane %v441, %v514
    %v516 = vmul.f32 %v498, %v503
    %v517 = vmul.f32 %v498, %v507
    %v518 = vmul.f32 %v498, %v511
    %v519 = vmul.f32 %v498, %v515
    %v520 = vadd.f32 %v492, %v516
    %v521 = vadd.f32 %v493, %v517
    %v522 = vadd.f32 %v494, %v518
    %v523 = vadd.f32 %v495, %v519
    %524 = vset.pattern.permute.xlu0 3
    %525 = vperm.xlu0 %524, %v442
    %v526 = vpop.permute.xlu0 %525
    %v528 = vlaneseq
    %v529 = vshrl.u32 %v528, 7
    %v530 = vsub.s32 3, %v529
    %v531 = vrot.slane %v438, %v530
    %v532 = vlaneseq
    %v533 = vshrl.u32 %v532, 7
    %v534 = vsub.s32 3, %v533
    %v535 = vrot.slane %v439, %v534
    %v536 = vlaneseq
    %v537 = vshrl.u32 %v536, 7
    %v538 = vsub.s32 3, %v537
    %v539 = vrot.slane %v440, %v538
    %v540 = vlaneseq
    %v541 = vshrl.u32 %v540, 7
    %v542 = vsub.s32 3, %v541
    %v543 = vrot.slane %v441, %v542
    %v544 = vmul.f32 %v526, %v531
    %v545 = vmul.f32 %v526, %v535
    %v546 = vmul.f32 %v526, %v539
    %v547 = vmul.f32 %v526, %v543
    %v548 = vadd.f32 %v520, %v544
    %v549 = vadd.f32 %v521, %v545
    %v550 = vadd.f32 %v522, %v546
    %v551 = vadd.f32 %v523, %v547
    %v552 = vld [vmem:[%s4] sm:$0xff]
    %v553 = vadd.f32 %v548, %v549
    %v554 = vadd.f32 %v553, %v550
    %v555 = vadd.f32 %v554, %v551
    %556 = vadd.xlane.f32.xlu0 %v555
    %v557 = vpop.xlane.xlu0 %556
    %v558 = vmul.f32 %v557, 0.001953125
    %v559 = vsub.f32 %v548, %v558
    %v560 = vsub.f32 %v549, %v558
    %v561 = vsub.f32 %v550, %v558
    %v562 = vsub.f32 %v551, %v558
    %v563 = vmul.f32 %v559, %v559
    %v564 = vmul.f32 %v560, %v560
    %v565 = vmul.f32 %v561, %v561
    %v566 = vmul.f32 %v562, %v562
    %v567 = vadd.f32 %v563, %v564
    %v568 = vadd.f32 %v567, %v565
    %v569 = vadd.f32 %v568, %v566
    %570 = vadd.xlane.f32.xlu0 %v569
    %v571 = vpop.xlane.xlu0 %570
    %v572 = vmul.f32 %v571, 0.001953125
    %v573 = vadd.f32 %v572, 1e-05
    %v574 = vrsqrt.pop %v573
    %v575 = vmul.f32 %v552, %v574
    %577 = vset.pattern.permute.xlu0 0
    %578 = vperm.xlu0 %577, %v575
    %v579 = vpop.permute.xlu0 %578
    %v581 = vmul.f32 %v559, %v579
    %v582 = vmul.f32 %v560, %v579
    %v583 = vmul.f32 %v561, %v579
    %v584 = vmul.f32 %v562, %v579
    %586 = vset.pattern.permute.xlu0 1
    %587 = vperm.xlu0 %586, %v552
    %v588 = vpop.permute.xlu0 %587
    %v590 = vadd.f32 %v581, %v588
    %v591 = vadd.f32 %v582, %v588
    %v592 = vadd.f32 %v583, %v588
    %v593 = vadd.f32 %v584, %v588
    %v594 = vmax.f32 %v590, 0.0
    %v595 = vmax.f32 %v591, 0.0
    %v596 = vmax.f32 %v592, 0.0
    %v597 = vmax.f32 %v593, 0.0
    %598 = vst [vmem:[#allocation5] sm:$0xff] %v594
    %599 = vst [vmem:[#allocation5 + $0x8] sm:$0xff] %v595
    %600 = vst [vmem:[#allocation5 + $0x10] sm:$0xff] %v596
    %601 = vst [vmem:[#allocation5 + $0x18] sm:$0xff] %v597
    // Predicated region
    $region26: #{tpu_custom_call.1} parent=1 // pred_check
      _
    $region27: #{tpu_custom_call.1} parent=1 // pred_check_branch
      %603 = sbr.rel (0) target = $region29
    $region28: #{tpu_custom_call.1} parent=1 // pred_region
      %s605 = ssub.s32 512, 512
      %606 = vsyncadd [#allocation4], %s605
      %s608 = sshll.u32 [#allocation5], 4
      %s609 = int_to_ptr.vmem [resolvable:$true] %s608
      %611 = dma.vmem_to_hbm [thread:$0]  %s609, 512, %s5, [#allocation4]
    $region29: #{tpu_custom_call.1} parent=1 // pred_fallthru
      _
    // Predicated region
    $region30: #{tpu_custom_call.1} parent=1 // pred_check
      _
    $region31: #{tpu_custom_call.1} parent=1 // pred_check_branch
      %613 = sbr.rel (0) target = $region33
    $region32: #{tpu_custom_call.1} parent=1 // pred_region
      %614 = dma.done [#allocation4], 512
    $region33: #{tpu_custom_call.1} parent=1 // pred_fallthru
      _
    %615 = vsyncpa [#allocation3], 1
    %616 = vsyncpa [#allocation4], 1

</llo_original>
